<compile_context>
chip_gen: v5e
topology: v5e:2x2
jax: 0.10.0
libtpu: 0.0.40
codegen_flags: <defaults>
</compile_context>

<pallas_src>
import jax
import jax.numpy as jnp
from jax.experimental import pallas as pl
from jax.experimental.pallas import tpu as pltpu


def _round_up(v: int, m: int) -> int:
    return ((v + m - 1) // m) * m


def _gcn_fused_kernel(a_ref, x_ref, w_ref, o_ref, acc_ref):
    """Accumulate M = A_tile @ X over the K axis; project M @ W at the end."""
    k = pl.program_id(1)

    @pl.when(k == 0)
    def _():
        acc_ref[...] = jnp.zeros_like(acc_ref)

    # (tm, tk) @ (tk, din_p) -> f32 accumulator (tm, din_p)
    acc_ref[...] += jnp.dot(
        a_ref[...], x_ref[...], preferred_element_type=jnp.float32
    )

    @pl.when(k == pl.num_programs(1) - 1)
    def _():
        # Projection: (tm, din_p) @ (din_p, dout_p); W already transposed in
        # the wrapper so this is a clean (K, N) operand.  f32 accumulation.
        m = acc_ref[...].astype(w_ref.dtype)
        o_ref[...] = jnp.dot(
            m, w_ref[...], preferred_element_type=jnp.float32
        ).astype(o_ref.dtype)


def _normalized_dense_adjacency(edge_index, num_nodes):
    """A_hat = D^{-1/2} (A + I) D^{-1/2} as a dense (N, N) f32 matrix.

    Matches PyG gcn_norm: duplicate edges are counted, a unit self-loop is
    added only to nodes that do not already have one.
    """
    src = edge_index[0]
    dst = edge_index[1]
    # out[i] aggregates from sources j of edges (j -> i): A[dst, src] += 1.
    a = jnp.zeros((num_nodes, num_nodes), jnp.float32).at[dst, src].add(1.0)
    idx = jnp.arange(num_nodes)
    diag = a[idx, idx]
    a = a.at[idx, idx].add(jnp.where(diag > 0.0, 0.0, 1.0))
    deg = a.sum(axis=1)  # >= 1 thanks to the self-loop
    d_inv_sqrt = jax.lax.rsqrt(deg)
    return a * d_inv_sqrt[:, None] * d_inv_sqrt[None, :]


def gcn_forward(x, edge_index, weight, *, row_tile=256, k_tile=512,
                compute_dtype=jnp.bfloat16):
    """Pallas GCN forward.

    x:          (num_nodes, dim_in) float
    edge_index: (2, num_edges) int32  (edge_index[0]=source, edge_index[1]=target)
    weight:     (dim_out, dim_in)     -- PyTorch nn.Linear convention
    returns     (num_nodes, dim_out)  float32
    """
    n, dim_in = x.shape
    dim_out, dim_in_w = weight.shape
    assert dim_in_w == dim_in

    a_hat = _normalized_dense_adjacency(edge_index, n)

    # Feature axes padded to lane multiples (unmasked, lane-dense stores).
    din_p = _round_up(dim_in, 128)
    dout_p = _round_up(dim_out, 128)

    # Row tile: multiple of 8, clamped to the (padded) node count.
    tm = min(_round_up(row_tile, 8), _round_up(n, 8))
    # K tile: multiple of 128 (it is A's lane axis), clamped to padded N.
    tk = min(_round_up(k_tile, 128), _round_up(n, 128))

    n_rows_p = _round_up(n, tm)   # padded row extent of A_hat / output
    n_k_p = _round_up(n, tk)      # padded contraction extent (A cols / X rows)

    a_p = (jnp.zeros((n_rows_p, n_k_p), compute_dtype)
           .at[:n, :n].set(a_hat.astype(compute_dtype)))
    x_p = (jnp.zeros((n_k_p, din_p), compute_dtype)
           .at[:n, :dim_in].set(x.astype(compute_dtype)))
    # One-time wrapper transpose: W^T padded to (din_p, dout_p).
    w_p = (jnp.zeros((din_p, dout_p), compute_dtype)
           .at[:dim_in, :dim_out].set(weight.T.astype(compute_dtype)))

    grid = (n_rows_p // tm, n_k_p // tk)

    out_p = pl.pallas_call(
        _gcn_fused_kernel,
        out_shape=jax.ShapeDtypeStruct((n_rows_p, dout_p), jnp.float32),
        grid_spec=pltpu.PrefetchScalarGridSpec(
            num_scalar_prefetch=0,
            grid=grid,
            in_specs=[
                pl.BlockSpec((tm, tk), lambda i, k: (i, k)),        # A_hat tile
                pl.BlockSpec((tk, din_p), lambda i, k: (k, 0)),     # X K-tile
                pl.BlockSpec((din_p, dout_p), lambda i, k: (0, 0)),  # W^T (resident)
            ],
            out_specs=pl.BlockSpec((tm, dout_p), lambda i, k: (i, 0)),
            scratch_shapes=[pltpu.VMEM((tm, din_p), jnp.float32)],
        ),
        compiler_params=pltpu.CompilerParams(
            dimension_semantics=("parallel", "arbitrary"),
            vmem_limit_bytes=64 * 1024 * 1024,
        ),
    )(a_p, x_p, w_p)

    return out_p[:n, :dim_out]


if __name__ == "__main__":
    # GCN(dim_in=32, dim_out=32, bias=False) on a small graph.
    num_nodes, num_edges = 16, 40
    dim_in, dim_out = 32, 32

    key = jax.random.PRNGKey(0)
    kx, ke, kw = jax.random.split(key, 3)

    x = jax.random.normal(kx, (num_nodes, dim_in), dtype=jnp.float32)
    edge_index = jax.random.randint(
        ke, (2, num_edges), 0, num_nodes, dtype=jnp.int32
    )
    # Deterministic weight init mimicking nn.Linear's U(-1/sqrt(dim_in), +).
    bound = 1.0 / (dim_in ** 0.5)
    weight = jax.random.uniform(
        kw, (dim_out, dim_in), dtype=jnp.float32, minval=-bound, maxval=bound
    )

    y = gcn_forward(x, edge_index, weight)
    jax.block_until_ready(y)
    assert y.shape == (num_nodes, dim_out)

    # Pure-JAX reference of the same GCN forward (f32).
    a_hat_ref = _normalized_dense_adjacency(edge_index, num_nodes)
    y_ref_f32 = a_hat_ref @ (x @ weight.T)

    # bf16-aware reference: same rounding of the streamed operands and of the
    # intermediate M, with f32 accumulation (mirrors the kernel exactly).
    a_bf = a_hat_ref.astype(jnp.bfloat16).astype(jnp.float32)
    x_bf = x.astype(jnp.bfloat16).astype(jnp.float32)
    w_bf = weight.astype(jnp.bfloat16).astype(jnp.float32)
    m_bf = (a_bf @ x_bf).astype(jnp.bfloat16).astype(jnp.float32)
    y_ref_bf16 = m_bf @ w_bf.T

    assert jnp.allclose(y, y_ref_bf16, atol=2e-3, rtol=2e-3)
    assert jnp.allclose(y, y_ref_f32, atol=5e-2, rtol=5e-2)

    print("KERNEL_OK")
</pallas_src>

<mosaic_0001>
module attributes {stable_mosaic.version = 11 : i64} {
  func.func @_gcn_fused_kernel(%arg0: i32, %arg1: i32, %arg2: memref<16x128xbf16, #tpu.memory_space<vmem>>, %arg3: memref<128x128xbf16, #tpu.memory_space<vmem>>, %arg4: memref<128x128xbf16, #tpu.memory_space<vmem>>, %arg5: memref<16x128xf32, #tpu.memory_space<vmem>>, %arg6: memref<16x128xf32, #tpu.memory_space<vmem>>) attributes {dimension_semantics = [#tpu.dimension_semantics<parallel>, #tpu.dimension_semantics<arbitrary>], iteration_bounds = array<i64: 1, 1>, scalar_prefetch = 0 : i64, scratch_operands = 1 : i64, tpu.core_type = #tpu.core_type<tc>, window_params = [{transform_indices = @transform_0, window_bounds = array<i64: 16, 128>}, {transform_indices = @transform_1, window_bounds = array<i64: 128, 128>}, {pipeline_mode = #tpu.pipeline_mode<synchronous>, transform_indices = @transform_2, window_bounds = array<i64: 128, 128>}, {transform_indices = @transform_3, window_bounds = array<i64: 16, 128>}]} {
    %c0_i32 = arith.constant 0 : i32
    %0 = arith.cmpi eq, %arg1, %c0_i32 : i32
    %1 = arith.extui %0 : i1 to i32
    %c0_i32_0 = arith.constant 0 : i32
    %2 = arith.cmpi ne, %1, %c0_i32_0 : i32
    scf.if %2 {
      %cst_10 = arith.constant 0.000000e+00 : f32
      %12 = vector.broadcast %cst_10 : f32 to vector<16x128xf32>
      %c0_11 = arith.constant 0 : index
      %c0_12 = arith.constant 0 : index
      %13 = vector.load %arg6[%c0_11, %c0_12] : memref<16x128xf32, #tpu.memory_space<vmem>>, vector<16x128xf32>
      tpu.vector_store %arg6[%c0_11, %c0_12], %12 {strides = array<i32>} : memref<16x128xf32, #tpu.memory_space<vmem>>, vector<16x128xf32>,
    } else {
    }
    %c0 = arith.constant 0 : index
    %c0_1 = arith.constant 0 : index
    %3 = vector.load %arg6[%c0, %c0_1] : memref<16x128xf32, #tpu.memory_space<vmem>>, vector<16x128xf32>
    %c0_2 = arith.constant 0 : index
    %c0_3 = arith.constant 0 : index
    %4 = vector.load %arg2[%c0_2, %c0_3] : memref<16x128xbf16, #tpu.memory_space<vmem>>, vector<16x128xbf16>
    %c0_4 = arith.constant 0 : index
    %c0_5 = arith.constant 0 : index
    %5 = vector.load %arg3[%c0_4, %c0_5] : memref<128x128xbf16, #tpu.memory_space<vmem>>, vector<128x128xbf16>
    %cst = arith.constant dense<0.000000e+00> : vector<16x128xf32>
    %6 = tpu.matmul %4, %5, %cst {dimension_numbers = #tpu.dot_dimension_numbers<[1], [0], [0], [1], [0, 0, 1, 1], [], []>} : vector<16x128xbf16>, vector<128x128xbf16>, vector<16x128xf32> -> vector<16x128xf32>
    %7 = arith.addf %3, %6 : vector<16x128xf32>
    %c0_6 = arith.constant 0 : index
    %c0_7 = arith.constant 0 : index
    %8 = vector.load %arg6[%c0_6, %c0_7] : memref<16x128xf32, #tpu.memory_space<vmem>>, vector<16x128xf32>
    tpu.vector_store %arg6[%c0_6, %c0_7], %7 {strides = array<i32>} : memref<16x128xf32, #tpu.memory_space<vmem>>, vector<16x128xf32>,
    %c0_i32_8 = arith.constant 0 : i32
    %9 = arith.cmpi eq, %arg1, %c0_i32_8 : i32
    %10 = arith.extui %9 : i1 to i32
    %c0_i32_9 = arith.constant 0 : i32
    %11 = arith.cmpi ne, %10, %c0_i32_9 : i32
    scf.if %11 {
      %c0_10 = arith.constant 0 : index
      %c0_11 = arith.constant 0 : index
      %12 = vector.load %arg6[%c0_10, %c0_11] : memref<16x128xf32, #tpu.memory_space<vmem>>, vector<16x128xf32>
      %13 = arith.truncf %12 : vector<16x128xf32> to vector<16x128xbf16>
      %c0_12 = arith.constant 0 : index
      %c0_13 = arith.constant 0 : index
      %14 = vector.load %arg4[%c0_12, %c0_13] : memref<128x128xbf16, #tpu.memory_space<vmem>>, vector<128x128xbf16>
      %cst_14 = arith.constant dense<0.000000e+00> : vector<16x128xf32>
      %15 = tpu.matmul %13, %14, %cst_14 {dimension_numbers = #tpu.dot_dimension_numbers<[1], [0], [0], [1], [0, 0, 1, 1], [], []>} : vector<16x128xbf16>, vector<128x128xbf16>, vector<16x128xf32> -> vector<16x128xf32>
      %c0_15 = arith.constant 0 : index
      %c0_16 = arith.constant 0 : index
      %16 = vector.load %arg5[%c0_15, %c0_16] : memref<16x128xf32, #tpu.memory_space<vmem>>, vector<16x128xf32>
      tpu.vector_store %arg5[%c0_15, %c0_16], %15 {strides = array<i32>} : memref<16x128xf32, #tpu.memory_space<vmem>>, vector<16x128xf32>,
    } else {
    }
    return
  }
  func.func @transform_0(%arg0: i32, %arg1: i32) -> (i32, i32) {
    %c0_i32 = arith.constant 0 : i32
    return %arg0, %arg1 : i32, i32
  }
  func.func @transform_1(%arg0: i32, %arg1: i32) -> (i32, i32) {
    %c0_i32 = arith.constant 0 : i32
    %c0_i32_0 = arith.constant 0 : i32
    return %arg1, %c0_i32 : i32, i32
  }
  func.func @transform_2(%arg0: i32, %arg1: i32) -> (i32, i32) {
    %c0_i32 = arith.constant 0 : i32
    %c0_i32_0 = arith.constant 0 : i32
    %c0_i32_1 = arith.constant 0 : i32
    return %c0_i32, %c0_i32_0 : i32, i32
  }
  func.func @transform_3(%arg0: i32, %arg1: i32) -> (i32, i32) {
    %c0_i32 = arith.constant 0 : i32
    %c0_i32_0 = arith.constant 0 : i32
    return %arg0, %c0_i32 : i32, i32
  }
}

</mosaic_0001>

<llo_original>
// kernel: tpu_custom_call.1
$region0: #{tpu_custom_call.1}
  #allocation0 [shape = 'u32[]', space=smem, size = 0x4, offset = 0x4, fixed_abs, tag = 'smem constant byte address 0x4 - core index']
  #allocation1 [shape = 'u32[72,128]{1,0:T(1,128)}', space=vmem, size = 0x9000, scoped, tag = 'internal scratch']
  #allocation2 [shape = 'f32[16,128]{1,0:T(8,128)}', space=vmem, size = 0x2000, scoped, tag = 'scratch operand']
  %s0 = inlined_call_operand.hbm [shape: bf16[16,128], index: 0, kind: input, shape index: {}]
  %s1 = inlined_call_operand.hbm [shape: bf16[128,128], index: 1, kind: input, shape index: {}]
  %s2 = inlined_call_operand.hbm [shape: bf16[128,128], index: 2, kind: input, shape index: {}]
  %s3 = inlined_call_operand.hbm [shape: f32[16,128], index: 3, kind: output, shape index: {}]
  %s4 = sld [smem:[#allocation0]]
  $region42: #{tpu_custom_call.1} parent=0
    _
  %s6 = ssub.s32 1, %s4
  %s7 = scalar_select 0, %s6, %s4
  $region1: #{tpu_custom_call.1} parent=0
    #allocation3 [shape = 'u8[4096]{0}', space=vmem, size = 0x1000, scoped, tag = 'input window, operand 0, single buffered']
    #allocation4 [shape = 's32[1]{0}', space=sflag, size = 0x4, scoped, tag = 'scoped memory for tpu_custom_call.1']
    #allocation5 [shape = 's32[1]{0}', space=sflag, size = 0x4, scoped, tag = 'scoped memory for tpu_custom_call.1']
    #allocation6 [shape = 'u8[32768]{0}', space=vmem, size = 0x8000, scoped, tag = 'input window, operand 1, single buffered']
    #allocation7 [shape = 's32[1]{0}', space=sflag, size = 0x4, scoped, tag = 'scoped memory for tpu_custom_call.1']
    #allocation8 [shape = 'u8[32768]{0}', space=vmem, size = 0x8000, scoped, tag = 'input window, operand 2, single buffered']
    #allocation9 [shape = 'u8[8192]{0}', space=vmem, size = 0x2000, scoped, tag = 'output window, operand 0, single buffered']
    %8 = vsyncpa [#allocation4], 0
    %9 = vsyncpa [#allocation7], 0
    %10 = vsyncpa [#allocation5], 0
    // Predicated region
    $region2: #{tpu_custom_call.1} parent=1 // pred_check
      _
    $region3: #{tpu_custom_call.1} parent=1 // pred_check_branch
      %12 = sbr.rel (0) target = $region5
    $region4: #{tpu_custom_call.1} parent=1 // pred_region
      %14 = vsyncadd [#allocation4], 0
      %s15 = sshll.u32 %s0, 4
      %s16 = int_to_ptr.hbm [resolvable:$true] %s15
      %s17 = sshll.u32 [#allocation3], 4
      %s18 = int_to_ptr.vmem [resolvable:$true] %s17
      %23 = dma.hbm_to_vmem [thread:$0]  %s16, 128, %s18, [#allocation4], 64, 64, 4
    $region5: #{tpu_custom_call.1} parent=1 // pred_fallthru
      _
    // Predicated region
    $region6: #{tpu_custom_call.1} parent=1 // pred_check
      _
    $region7: #{tpu_custom_call.1} parent=1 // pred_check_branch
      %25 = sbr.rel (0) target = $region9
    $region8: #{tpu_custom_call.1} parent=1 // pred_region
      %27 = vsyncadd [#allocation7], 0
      %s28 = sshll.u32 %s1, 4
      %s29 = int_to_ptr.hbm [resolvable:$true] %s28
      %s30 = sshll.u32 [#allocation6], 4
      %s31 = int_to_ptr.vmem [resolvable:$true] %s30
      %36 = dma.hbm_to_vmem [thread:$0]  %s29, 1024, %s31, [#allocation7], 64, 64, 4
    $region9: #{tpu_custom_call.1} parent=1 // pred_fallthru
      _
    // Predicated region
    $region10: #{tpu_custom_call.1} parent=1 // pred_check
      _
    $region11: #{tpu_custom_call.1} parent=1 // pred_check_branch
      %38 = sbr.rel (0) target = $region13
    $region12: #{tpu_custom_call.1} parent=1 // pred_region
      %40 = vsyncadd [#allocation7], 0
      %s41 = sshll.u32 %s2, 4
      %s42 = int_to_ptr.hbm [resolvable:$true] %s41
      %s43 = sshll.u32 [#allocation8], 4
      %s44 = int_to_ptr.vmem [resolvable:$true] %s43
      %49 = dma.hbm_to_vmem [thread:$0]  %s42, 1024, %s44, [#allocation7], 64, 64, 4
    $region13: #{tpu_custom_call.1} parent=1 // pred_fallthru
      _
    // Predicated region
    $region14: #{tpu_custom_call.1} parent=1 // pred_check
      _
    $region15: #{tpu_custom_call.1} parent=1 // pred_check_branch
      %51 = sbr.rel (0) target = $region17
    $region16: #{tpu_custom_call.1} parent=1 // pred_region
      %53 = dma.done [#allocation4], 128
    $region17: #{tpu_custom_call.1} parent=1 // pred_fallthru
      _
    // Predicated region
    $region18: #{tpu_custom_call.1} parent=1 // pred_check
      _
    $region19: #{tpu_custom_call.1} parent=1 // pred_check_branch
      %55 = sbr.rel (0) target = $region21
    $region20: #{tpu_custom_call.1} parent=1 // pred_region
      %57 = dma.done [#allocation7], 1024
    $region21: #{tpu_custom_call.1} parent=1 // pred_fallthru
      _
    // Predicated region
    $region22: #{tpu_custom_call.1} parent=1 // pred_check
      _
    $region23: #{tpu_custom_call.1} parent=1 // pred_check_branch
      %59 = sbr.rel (0) target = $region25
    $region24: #{tpu_custom_call.1} parent=1 // pred_region
      %61 = dma.done [#allocation7], 1024
    $region25: #{tpu_custom_call.1} parent=1 // pred_fallthru
      _
    %p62 = scmp.eq.s32.totalorder 0, 0
    // Predicated region
    $region26: #{tpu_custom_call.1} parent=1 // pred_check
      %p63 = pneg %p62
    $region27: #{tpu_custom_call.1} parent=1 // pred_check_branch
      %65 = sbr.rel (%p63) target = $region29
    $region28: #{tpu_custom_call.1} parent=1 // pred_region
      %66 = vst [vmem:[#allocation2] sm:$0xff] 0.0
      %67 = vst [vmem:[#allocation2 + $0x8] sm:$0xff] 0.0
    $region29: #{tpu_custom_call.1} parent=1 // pred_fallthru
      _
    %v68 = vld [vmem:[#allocation2] sm:$0xff]
    %v69 = vld [vmem:[#allocation2 + $0x8] sm:$0xff]
    %v70 = vld [vmem:[#allocation3] sm:$0xf]
    %v71 = vld [vmem:[#allocation3 + $0x4] sm:$0xf]
    %v72 = vld [vmem:[#allocation6] sm:$0xf]
    %v73 = vld [vmem:[#allocation6 + $0x4] sm:$0xf]
    %v74 = vld [vmem:[#allocation6 + $0x8] sm:$0xf]
    %v75 = vld [vmem:[#allocation6 + $0xc] sm:$0xf]
    %v76 = vld [vmem:[#allocation6 + $0x10] sm:$0xf]
    %v77 = vld [vmem:[#allocation6 + $0x14] sm:$0xf]
    %v78 = vld [vmem:[#allocation6 + $0x18] sm:$0xf]
    %v79 = vld [vmem:[#allocation6 + $0x1c] sm:$0xf]
    %v80 = vld [vmem:[#allocation6 + $0x20] sm:$0xf]
    %v81 = vld [vmem:[#allocation6 + $0x24] sm:$0xf]
    %v82 = vld [vmem:[#allocation6 + $0x28] sm:$0xf]
    %v83 = vld [vmem:[#allocation6 + $0x2c] sm:$0xf]
    %v84 = vld [vmem:[#allocation6 + $0x30] sm:$0xf]
    %v85 = vld [vmem:[#allocation6 + $0x34] sm:$0xf]
    %v86 = vld [vmem:[#allocation6 + $0x38] sm:$0xf]
    %v87 = vld [vmem:[#allocation6 + $0x3c] sm:$0xf]
    %v90 = vunpack.c.l.b16 %v70
    %v91 = vunpack.c.l.b16 %v71
    %v92 = vpack.c.b16 %v91, %v90
    %v110 = vunpack.c.l.b16 %v72
    %v111 = vunpack.c.l.b16 %v73
    %v112 = vunpack.c.l.b16 %v74
    %v113 = vunpack.c.l.b16 %v75
    %v114 = vunpack.c.l.b16 %v76
    %v115 = vunpack.c.l.b16 %v77
    %v116 = vunpack.c.l.b16 %v78
    %v117 = vunpack.c.l.b16 %v79
    %v118 = vunpack.c.l.b16 %v80
    %v119 = vunpack.c.l.b16 %v81
    %v120 = vunpack.c.l.b16 %v82
    %v121 = vunpack.c.l.b16 %v83
    %v122 = vunpack.c.l.b16 %v84
    %v123 = vunpack.c.l.b16 %v85
    %v124 = vunpack.c.l.b16 %v86
    %v125 = vunpack.c.l.b16 %v87
    %v126 = vpack.c.b16 %v111, %v110
    %v127 = vpack.c.b16 %v113, %v112
    %v128 = vpack.c.b16 %v115, %v114
    %v129 = vpack.c.b16 %v117, %v116
    %v130 = vpack.c.b16 %v119, %v118
    %v131 = vpack.c.b16 %v121, %v120
    %v132 = vpack.c.b16 %v123, %v122
    %v133 = vpack.c.b16 %v125, %v124
    %142 = vmatpush.bf16.msra.mxu0 %v133
    %143 = vmatpush.bf16.msra.mxu0 %v132
    %144 = vmatpush.bf16.msra.mxu0 %v131
    %145 = vmatpush.bf16.msra.mxu0 %v130
    %146 = vmatpush.bf16.msra.mxu0 %v129
    %147 = vmatpush.bf16.msra.mxu0 %v128
    %148 = vmatpush.bf16.msra.mxu0 %v127
    %149 = vmatpush.bf16.msra.mxu0 %v126
    %150 = vmatmul.bf16.gmra.mxu0 %v92
    %v151 = vpop.f32.mrf.mxu0
    %v152 = vadd.f32 0.0, %v151
    %v153 = vpop.f32.mrf.mxu0
    %v154 = vadd.f32 0.0, %v153
    %155 = vdwg.mxu0
    %v156 = vadd.f32 %v68, %v152
    %v157 = vadd.f32 %v69, %v154
    %158 = vst [vmem:[#allocation2] sm:$0xff] %v156
    %159 = vst [vmem:[#allocation2 + $0x8] sm:$0xff] %v157
    // Predicated region
    $region30: #{tpu_custom_call.1} parent=1 // pred_check
      %p160 = pneg %p62
    $region31: #{tpu_custom_call.1} parent=1 // pred_check_branch
      %162 = sbr.rel (%p160) target = $region33
    $region32: #{tpu_custom_call.1} parent=1 // pred_region
      %v163 = vld [vmem:[#allocation2] sm:$0xff]
      %v164 = vld [vmem:[#allocation2 + $0x8] sm:$0xff]
      %v165 = vpack.c.bf16 %v164, %v163
      %v166 = vld [vmem:[#allocation8] sm:$0xf]
      %v167 = vld [vmem:[#allocation8 + $0x4] sm:$0xf]
      %v168 = vld [vmem:[#allocation8 + $0x8] sm:$0xf]
      %v169 = vld [vmem:[#allocation8 + $0xc] sm:$0xf]
      %v170 = vld [vmem:[#allocation8 + $0x10] sm:$0xf]
      %v171 = vld [vmem:[#allocation8 + $0x14] sm:$0xf]
      %v172 = vld [vmem:[#allocation8 + $0x18] sm:$0xf]
      %v173 = vld [vmem:[#allocation8 + $0x1c] sm:$0xf]
      %v174 = vld [vmem:[#allocation8 + $0x20] sm:$0xf]
      %v175 = vld [vmem:[#allocation8 + $0x24] sm:$0xf]
      %v176 = vld [vmem:[#allocation8 + $0x28] sm:$0xf]
      %v177 = vld [vmem:[#allocation8 + $0x2c] sm:$0xf]
      %v178 = vld [vmem:[#allocation8 + $0x30] sm:$0xf]
      %v179 = vld [vmem:[#allocation8 + $0x34] sm:$0xf]
      %v180 = vld [vmem:[#allocation8 + $0x38] sm:$0xf]
      %v181 = vld [vmem:[#allocation8 + $0x3c] sm:$0xf]
      %v198 = vunpack.c.l.b16 %v166
      %v199 = vunpack.c.l.b16 %v167
      %v200 = vunpack.c.l.b16 %v168
      %v201 = vunpack.c.l.b16 %v169
      %v202 = vunpack.c.l.b16 %v170
      %v203 = vunpack.c.l.b16 %v171
      %v204 = vunpack.c.l.b16 %v172
      %v205 = vunpack.c.l.b16 %v173
      %v206 = vunpack.c.l.b16 %v174
      %v207 = vunpack.c.l.b16 %v175
      %v208 = vunpack.c.l.b16 %v176
      %v209 = vunpack.c.l.b16 %v177
      %v210 = vunpack.c.l.b16 %v178
      %v211 = vunpack.c.l.b16 %v179
      %v212 = vunpack.c.l.b16 %v180
      %v213 = vunpack.c.l.b16 %v181
      %v214 = vpack.c.b16 %v199, %v198
      %v215 = vpack.c.b16 %v201, %v200
      %v216 = vpack.c.b16 %v203, %v202
      %v217 = vpack.c.b16 %v205, %v204
      %v218 = vpack.c.b16 %v207, %v206
      %v219 = vpack.c.b16 %v209, %v208
      %v220 = vpack.c.b16 %v211, %v210
      %v221 = vpack.c.b16 %v213, %v212
      %230 = vmatpush.bf16.msra.mxu0 %v221
      %231 = vmatpush.bf16.msra.mxu0 %v220
      %232 = vmatpush.bf16.msra.mxu0 %v219
      %233 = vmatpush.bf16.msra.mxu0 %v218
      %234 = vmatpush.bf16.msra.mxu0 %v217
      %235 = vmatpush.bf16.msra.mxu0 %v216
      %236 = vmatpush.bf16.msra.mxu0 %v215
      %237 = vmatpush.bf16.msra.mxu0 %v214
      %238 = vmatmul.bf16.gmra.mxu0 %v165
      %v239 = vpop.f32.mrf.mxu0
      %v240 = vadd.f32 0.0, %v239
      %v241 = vpop.f32.mrf.mxu0
      %v242 = vadd.f32 0.0, %v241
      %243 = vdwg.mxu0
      %244 = vst [vmem:[#allocation9] sm:$0xff] %v240
      %245 = vst [vmem:[#allocation9 + $0x8] sm:$0xff] %v242
    $region33: #{tpu_custom_call.1} parent=1 // pred_fallthru
      _
    // Predicated region
    $region34: #{tpu_custom_call.1} parent=1 // pred_check
      _
    $region35: #{tpu_custom_call.1} parent=1 // pred_check_branch
      %247 = sbr.rel (0) target = $region37
    $region36: #{tpu_custom_call.1} parent=1 // pred_region
      %249 = vsyncadd [#allocation5], 0
      %s250 = sshll.u32 [#allocation9], 4
      %s251 = int_to_ptr.vmem [resolvable:$true] %s250
      %s252 = sshll.u32 %s3, 4
      %s253 = int_to_ptr.hbm [resolvable:$true] %s252
      %258 = dma.vmem_to_hbm [thread:$0]  %s251, 256, %s253, [#allocation5], 128, 128, 8
    $region37: #{tpu_custom_call.1} parent=1 // pred_fallthru
      _
    // Predicated region
    $region38: #{tpu_custom_call.1} parent=1 // pred_check
      _
    $region39: #{tpu_custom_call.1} parent=1 // pred_check_branch
      %260 = sbr.rel (0) target = $region41
    $region40: #{tpu_custom_call.1} parent=1 // pred_region
      %262 = dma.done [#allocation5], 256
    $region41: #{tpu_custom_call.1} parent=1 // pred_fallthru
      _
    %263 = vsyncpa [#allocation4], 1
    %264 = vsyncpa [#allocation7], 1
    %265 = vsyncpa [#allocation5], 1

</llo_original>
